<compile_context>
chip_gen: v5e
topology: v5e:2x2
jax: 0.10.0
libtpu: 0.0.40
codegen_flags: <defaults>
</compile_context>

<pallas_src>
import jax
import jax.numpy as jnp
from jax.experimental import pallas as pl
from jax.experimental.pallas import tpu as pltpu


def _affine_rows_kernel(x_ref, s_ref, b_ref, o_ref):
    # x_ref: (TM, L) tile; s_ref/b_ref: (TM, 1) per-row scale/offset broadcast over lanes.
    o_ref[...] = x_ref[...] * s_ref[...] + b_ref[...]


def _scale_rows_kernel(x_ref, s_ref, o_ref):
    o_ref[...] = x_ref[...] * s_ref[...]


def _row_tile(rows, lanes, itemsize, max_tile_bytes=2 << 20):
    """Largest lane-dense row tile (multiple of the packed-sublane count) within budget."""
    sub = 8 * max(1, 4 // itemsize)            # 8 for f32, 16 for bf16, 32 for int8
    max_rows = max(1, max_tile_bytes // max(1, lanes * itemsize))
    tm = min(rows, max_rows)
    if rows >= sub:
        tm = max(sub, (tm // sub) * sub)       # multiple of sublane pack, at least one pack
    else:
        tm = rows                              # full (small) row extent is always legal
    return tm


def _apply_rowwise(x2d, scale_row, offset_row=None):
    """y[r, :] = x[r, :] * scale_row[r] (+ offset_row[r]) as one lane-dense pallas_call."""
    R, L = x2d.shape
    tm = _row_tile(R, L, x2d.dtype.itemsize)
    grid = (pl.cdiv(R, tm),)

    in_specs = [
        pl.BlockSpec((tm, L), lambda i: (i, 0)),   # full H*W per block -> unmasked vst
        pl.BlockSpec((tm, 1), lambda i: (i, 0)),   # per-row scale, one tiny DMA per row tile
    ]
    args = [x2d, scale_row]
    kernel = _scale_rows_kernel
    if offset_row is not None:
        in_specs.append(pl.BlockSpec((tm, 1), lambda i: (i, 0)))
        args.append(offset_row)
        kernel = _affine_rows_kernel

    return pl.pallas_call(
        kernel,
        out_shape=jax.ShapeDtypeStruct((R, L), x2d.dtype),
        grid_spec=pltpu.PrefetchScalarGridSpec(
            num_scalar_prefetch=0,
            grid=grid,
            in_specs=in_specs,
            out_specs=pl.BlockSpec((tm, L), lambda i: (i, 0)),
        ),
        compiler_params=pltpu.CompilerParams(
            dimension_semantics=("parallel",),     # row tiles shard across v7x's 2 TCs
        ),
    )(*args)


def relaxed_batchnorm2d_forward(curr_head, curr_errors, weight, bias,
                                running_mean, running_var, eps=1e-5,
                                momentum=0.1, training=False):
    """Pallas implementation of RelaxedBatchNorm2d.forward.

    curr_head   : (N, C, H, W)
    curr_errors : (..., C, H, W)  (e.g. (E, N, C, H, W)), scaled per channel
    weight, bias, running_mean, running_var : (C,)

    Returns (new_head, new_errors) in eval mode,
            (new_head, new_errors, new_running_mean, new_running_var) in training mode.
    """
    N, C, H, W = curr_head.shape
    HW = H * W
    err_shape = curr_errors.shape
    assert err_shape[-3:] == (C, H, W), "curr_errors must end in (C, H, W)"
    lead = 1
    for d in err_shape[:-3]:
        lead *= int(d)

    if training:
        # TODO(synk): track_running_stats=False path (running stats <- batch stats) is
        # a trivial variant; this implements the common track_running_stats=True case.
        m = 1.0 if momentum is None else momentum
        mean = jnp.mean(curr_head, axis=(0, 2, 3))
        var = jnp.var(curr_head, axis=(0, 2, 3))   # unbiased=False, matches the module
        running_mean = running_mean * (1.0 - m) + mean * m
        running_var = running_var * (1.0 - m) + var * m

    # per-channel affine params (length-C math, plain JAX)
    c = weight / jnp.sqrt(running_var + eps)
    b = -running_mean * c + bias
    c = c.astype(curr_head.dtype)
    b = b.astype(curr_head.dtype)

    # per-row params for the (rows, H*W) flattening: row r -> channel r % C
    c_head = jnp.tile(c, N).reshape(N * C, 1)
    b_head = jnp.tile(b, N).reshape(N * C, 1)
    c_err = jnp.tile(c.astype(curr_errors.dtype), lead).reshape(lead * C, 1)

    head2d = curr_head.reshape(N * C, HW)
    err2d = curr_errors.reshape(lead * C, HW)

    new_head = _apply_rowwise(head2d, c_head, b_head).reshape(N, C, H, W)
    new_errors = _apply_rowwise(err2d, c_err).reshape(err_shape)

    if training:
        return new_head, new_errors, running_mean, running_var
    return new_head, new_errors


if __name__ == "__main__":
    key = jax.random.PRNGKey(0)
    k1, k2, k3, k4, k5, k6 = jax.random.split(key, 6)

    N, C, H, W = 2, 4, 16, 16
    NUM_ERR = 3
    EPS = 1e-5

    curr_head = jax.random.normal(k1, (N, C, H, W), dtype=jnp.float32)
    curr_errors = jax.random.normal(k2, (NUM_ERR, N, C, H, W), dtype=jnp.float32)
    weight = jax.random.normal(k3, (C,), dtype=jnp.float32)
    bias = jax.random.normal(k4, (C,), dtype=jnp.float32)
    running_mean = jax.random.normal(k5, (C,), dtype=jnp.float32)
    running_var = jax.random.uniform(k6, (C,), dtype=jnp.float32, minval=0.5, maxval=1.5)

    # --- eval mode (bn.training == False) ---
    new_head, new_errors = relaxed_batchnorm2d_forward(
        curr_head, curr_errors, weight, bias, running_mean, running_var, eps=EPS)
    new_head = jax.block_until_ready(new_head)
    new_errors = jax.block_until_ready(new_errors)

    c_ref = weight / jnp.sqrt(running_var + EPS)
    b_ref = -running_mean * c_ref + bias
    ref_head = curr_head * c_ref.reshape(1, C, 1, 1) + b_ref.reshape(1, C, 1, 1)
    ref_err = curr_errors * c_ref.reshape(1, 1, C, 1, 1)
    assert jnp.allclose(new_head, ref_head, atol=1e-5, rtol=1e-5), "eval head mismatch"
    assert jnp.allclose(new_errors, ref_err, atol=1e-5, rtol=1e-5), "eval errors mismatch"

    # --- training mode (running-stat update, then normalize with updated stats) ---
    tr_head, tr_err, rm, rv = relaxed_batchnorm2d_forward(
        curr_head, curr_errors, weight, bias, running_mean, running_var,
        eps=EPS, momentum=0.1, training=True)
    tr_head = jax.block_until_ready(tr_head)
    tr_err = jax.block_until_ready(tr_err)

    mean = jnp.mean(curr_head, axis=(0, 2, 3))
    var = jnp.var(curr_head, axis=(0, 2, 3))
    rm_ref = running_mean * 0.9 + mean * 0.1
    rv_ref = running_var * 0.9 + var * 0.1
    c_t = weight / jnp.sqrt(rv_ref + EPS)
    b_t = -rm_ref * c_t + bias
    assert jnp.allclose(rm, rm_ref, atol=1e-5, rtol=1e-5), "running_mean mismatch"
    assert jnp.allclose(rv, rv_ref, atol=1e-5, rtol=1e-5), "running_var mismatch"
    assert jnp.allclose(tr_head, curr_head * c_t.reshape(1, C, 1, 1) + b_t.reshape(1, C, 1, 1),
                        atol=1e-5, rtol=1e-5), "train head mismatch"
    assert jnp.allclose(tr_err, curr_errors * c_t.reshape(1, 1, C, 1, 1),
                        atol=1e-5, rtol=1e-5), "train errors mismatch"

    print("KERNEL_OK")
</pallas_src>

<mosaic_0001>
module attributes {stable_mosaic.version = 11 : i64} {
  func.func @_affine_rows_kernel(%arg0: i32, %arg1: memref<8x256xf32, #tpu.memory_space<vmem>>, %arg2: memref<8x1xf32, #tpu.memory_space<vmem>>, %arg3: memref<8x1xf32, #tpu.memory_space<vmem>>, %arg4: memref<8x256xf32, #tpu.memory_space<vmem>>) attributes {dimension_semantics = [#tpu.dimension_semantics<parallel>], iteration_bounds = array<i64: 1>, scalar_prefetch = 0 : i64, scratch_operands = 0 : i64, tpu.core_type = #tpu.core_type<tc>, window_params = [{transform_indices = @transform_0, window_bounds = array<i64: 8, 256>}, {transform_indices = @transform_1, window_bounds = array<i64: 8, 1>}, {transform_indices = @transform_2, window_bounds = array<i64: 8, 1>}, {transform_indices = @transform_3, window_bounds = array<i64: 8, 256>}]} {
    %c0 = arith.constant 0 : index
    %c0_0 = arith.constant 0 : index
    %0 = vector.load %arg1[%c0, %c0_0] : memref<8x256xf32, #tpu.memory_space<vmem>>, vector<8x256xf32>
    %c0_1 = arith.constant 0 : index
    %c0_2 = arith.constant 0 : index
    %1 = vector.load %arg2[%c0_1, %c0_2] : memref<8x1xf32, #tpu.memory_space<vmem>>, vector<8x1xf32>
    %2 = vector.broadcast %1 : vector<8x1xf32> to vector<8x256xf32>
    %3 = arith.mulf %0, %2 : vector<8x256xf32>
    %c0_3 = arith.constant 0 : index
    %c0_4 = arith.constant 0 : index
    %4 = vector.load %arg3[%c0_3, %c0_4] : memref<8x1xf32, #tpu.memory_space<vmem>>, vector<8x1xf32>
    %5 = vector.broadcast %4 : vector<8x1xf32> to vector<8x256xf32>
    %6 = arith.addf %3, %5 : vector<8x256xf32>
    %c0_5 = arith.constant 0 : index
    %c0_6 = arith.constant 0 : index
    %7 = vector.load %arg4[%c0_5, %c0_6] : memref<8x256xf32, #tpu.memory_space<vmem>>, vector<8x256xf32>
    tpu.vector_store %arg4[%c0_5, %c0_6], %6 {strides = array<i32>} : memref<8x256xf32, #tpu.memory_space<vmem>>, vector<8x256xf32>,
    return
  }
  func.func @transform_0(%arg0: i32) -> (i32, i32) {
    %c0_i32 = arith.constant 0 : i32
    %c0_i32_0 = arith.constant 0 : i32
    return %arg0, %c0_i32 : i32, i32
  }
  func.func @transform_1(%arg0: i32) -> (i32, i32) {
    %c0_i32 = arith.constant 0 : i32
    %c0_i32_0 = arith.constant 0 : i32
    return %arg0, %c0_i32 : i32, i32
  }
  func.func @transform_2(%arg0: i32) -> (i32, i32) {
    %c0_i32 = arith.constant 0 : i32
    %c0_i32_0 = arith.constant 0 : i32
    return %arg0, %c0_i32 : i32, i32
  }
  func.func @transform_3(%arg0: i32) -> (i32, i32) {
    %c0_i32 = arith.constant 0 : i32
    %c0_i32_0 = arith.constant 0 : i32
    return %arg0, %c0_i32 : i32, i32
  }
}

</mosaic_0001>

<llo_original>
// kernel: tpu_custom_call.1
$region0: #{tpu_custom_call.1}
  #allocation0 [shape = 'u32[]', space=smem, size = 0x4, offset = 0x4, fixed_abs, tag = 'smem constant byte address 0x4 - core index']
  #allocation1 [shape = 'u32[72,128]{1,0:T(1,128)}', space=vmem, size = 0x9000, scoped, tag = 'internal scratch']
  %s0 = inlined_call_operand.vmem [shape: f32[8,256], index: 0, kind: input, shape index: {}]
  %s1 = inlined_call_operand.vmem [shape: f32[8,1], index: 1, kind: input, shape index: {}]
  %s2 = inlined_call_operand.vmem [shape: f32[8,1], index: 2, kind: input, shape index: {}]
  %s3 = inlined_call_operand.hbm [shape: f32[8,256], index: 3, kind: output, shape index: {}]
  %s4 = sld [smem:[#allocation0]]
  $region22: #{tpu_custom_call.1} parent=0
    _
  %s6 = ssub.s32 1, %s4
  %s7 = scalar_select 0, %s6, %s4
  $region1: #{tpu_custom_call.1} parent=0
    #allocation2 [shape = 'u8[8192]{0}', space=vmem, size = 0x2000, scoped, tag = 'output window, operand 0, single buffered']
    #allocation3 [shape = 's32[1]{0}', space=sflag, size = 0x4, scoped, tag = 'scoped memory for tpu_custom_call.1']
    %8 = vsyncpa [#allocation3], 0
    // Predicated region
    $region2: #{tpu_custom_call.1} parent=1 // pred_check
      _
    $region3: #{tpu_custom_call.1} parent=1 // pred_check_branch
      %10 = sbr.rel (0) target = $region5
    $region4: #{tpu_custom_call.1} parent=1 // pred_region
      _
    $region5: #{tpu_custom_call.1} parent=1 // pred_fallthru
      _
    // Predicated region
    $region6: #{tpu_custom_call.1} parent=1 // pred_check
      _
    $region7: #{tpu_custom_call.1} parent=1 // pred_check_branch
      %12 = sbr.rel (0) target = $region9
    $region8: #{tpu_custom_call.1} parent=1 // pred_region
      _
    $region9: #{tpu_custom_call.1} parent=1 // pred_fallthru
      _
    // Predicated region
    $region10: #{tpu_custom_call.1} parent=1 // pred_check
      _
    $region11: #{tpu_custom_call.1} parent=1 // pred_check_branch
      %14 = sbr.rel (0) target = $region13
    $region12: #{tpu_custom_call.1} parent=1 // pred_region
      _
    $region13: #{tpu_custom_call.1} parent=1 // pred_fallthru
      _
    %v15 = vld [vmem:[%s0] sm:$0xff]
    %v16 = vld [vmem:[%s0 + $0x8] sm:$0xff]
    %v17 = vld [vmem:[%s1] sm:$0xff]
    %19 = vset.pattern.permute.xlu0 0
    %20 = vperm.xlu0 %19, %v17
    %v21 = vpop.permute.xlu0 %20
    %v23 = vmul.f32 %v15, %v21
    %v24 = vmul.f32 %v16, %v21
    %v25 = vld [vmem:[%s2] sm:$0xff]
    %27 = vset.pattern.permute.xlu0 0
    %28 = vperm.xlu0 %27, %v25
    %v29 = vpop.permute.xlu0 %28
    %v31 = vadd.f32 %v23, %v29
    %v32 = vadd.f32 %v24, %v29
    %33 = vst [vmem:[#allocation2] sm:$0xff] %v31
    %34 = vst [vmem:[#allocation2 + $0x8] sm:$0xff] %v32
    // Predicated region
    $region14: #{tpu_custom_call.1} parent=1 // pred_check
      _
    $region15: #{tpu_custom_call.1} parent=1 // pred_check_branch
      %36 = sbr.rel (0) target = $region17
    $region16: #{tpu_custom_call.1} parent=1 // pred_region
      %38 = vsyncadd [#allocation3], 0
      %s40 = sshll.u32 [#allocation2], 4
      %s41 = int_to_ptr.vmem [resolvable:$true] %s40
      %s42 = sshll.u32 %s3, 4
      %s43 = int_to_ptr.hbm [resolvable:$true] %s42
      %45 = dma.vmem_to_hbm [thread:$0]  %s41, 256, %s43, [#allocation3]
    $region17: #{tpu_custom_call.1} parent=1 // pred_fallthru
      _
    // Predicated region
    $region18: #{tpu_custom_call.1} parent=1 // pred_check
      _
    $region19: #{tpu_custom_call.1} parent=1 // pred_check_branch
      %47 = sbr.rel (0) target = $region21
    $region20: #{tpu_custom_call.1} parent=1 // pred_region
      %49 = dma.done [#allocation3], 256
    $region21: #{tpu_custom_call.1} parent=1 // pred_fallthru
      _
    %50 = vsyncpa [#allocation3], 1

</llo_original>
